<compile_context>
chip_gen: v6e
topology: v6e:2x2x1
jax: 0.10.0
libtpu: 0.0.40
codegen_flags: <defaults>
</compile_context>

<pallas_src>
import functools

import jax
import jax.numpy as jnp
from jax.experimental import pallas as pl
from jax.experimental.pallas import tpu as pltpu


def layernorm_kernel(x_ref, gamma_ref, beta_ref, o_ref, *, eps, inv_c):
    # x_ref: (TN, C) tile in VMEM; gamma_ref / beta_ref: (1, C).
    x = x_ref[...].astype(jnp.float32)

    # Single pass over x: both row reductions issued directly on x (two
    # independent XLU reduces), mean/var via 1/C constants, rsqrt on the EUP.
    sum_x = jnp.sum(x, axis=-1, keepdims=True)
    sum_xx = jnp.sum(x * x, axis=-1, keepdims=True)
    mean = sum_x * inv_c
    var = jnp.maximum(sum_xx * inv_c - mean * mean, 0.0)
    inv = jax.lax.rsqrt(var + eps)

    g = gamma_ref[...].astype(jnp.float32)
    b = beta_ref[...].astype(jnp.float32)
    y = (x - mean) * inv * g + b
    o_ref[...] = y.astype(o_ref.dtype)


def _round_up(v, m):
    return ((v + m - 1) // m) * m


def _choose_row_tile(n, max_row_tile=512):
    """Pick a multiple-of-8 row tile that evenly covers n with >= 2 blocks.

    - n <= 16: one full-extent block (block == full dim bypasses the 8-row rule).
    - otherwise: split into max(2, cdiv(n, max_row_tile)) near-equal blocks so
      both v7x TensorCores get work and the tail block (if any) is small.
    """
    if n <= 16:
        return n
    nb = max(2, pl.cdiv(n, max_row_tile))
    tn = _round_up(pl.cdiv(n, nb), 8)
    return min(tn, _round_up(n, 8))


def layernorm(x, gamma, beta, eps=1e-5, max_row_tile=512):
    """LayerNorm over the last axis of x (any leading shape), elementwise affine."""
    orig_shape = x.shape
    c = orig_shape[-1]
    n = 1
    for d in orig_shape[:-1]:
        n *= d

    x2 = x.reshape(n, c)
    gamma2 = gamma.reshape(1, c)
    beta2 = beta.reshape(1, c)

    tn = _choose_row_tile(n, max_row_tile)
    grid = (pl.cdiv(n, tn),)  # ragged last block is masked by Pallas

    kernel = functools.partial(layernorm_kernel, eps=float(eps), inv_c=1.0 / float(c))

    itemsize = jnp.dtype(x.dtype).itemsize
    cost = pl.CostEstimate(
        flops=5 * n * c,
        transcendentals=n,
        bytes_accessed=2 * n * c * itemsize + 2 * c * 4,
    )

    out = pl.pallas_call(
        kernel,
        out_shape=jax.ShapeDtypeStruct((n, c), x.dtype),
        grid=grid,
        in_specs=[
            pl.BlockSpec((tn, c), lambda i: (i, 0)),
            pl.BlockSpec((1, c), lambda i: (0, 0)),
            pl.BlockSpec((1, c), lambda i: (0, 0)),
        ],
        out_specs=pl.BlockSpec((tn, c), lambda i: (i, 0)),
        compiler_params=pltpu.CompilerParams(
            dimension_semantics=("parallel",),
        ),
        cost_estimate=cost,
    )(x2, gamma2, beta2)

    return out.reshape(orig_shape)


def _ref_layernorm(x, gamma, beta, eps=1e-5):
    mean = jnp.mean(x, axis=-1, keepdims=True)
    var = jnp.mean((x - mean) ** 2, axis=-1, keepdims=True)
    return (x - mean) / jnp.sqrt(var + eps) * gamma + beta


if __name__ == "__main__":
    key = jax.random.PRNGKey(0)
    kx, kg, kb, kx2 = jax.random.split(key, 4)

    # LayerNorm((512,)) params (PyTorch inits weight=1, bias=0; perturb slightly
    # to exercise the affine path).
    gamma = 1.0 + 0.01 * jax.random.normal(kg, (512,), dtype=jnp.float32)
    beta = 0.01 * jax.random.normal(kb, (512,), dtype=jnp.float32)

    # 1) The module's forward shape: [1, 14, 14, 512] -> N=196 rows, 2 blocks.
    x = jax.random.normal(kx, (1, 14, 14, 512), dtype=jnp.float32)
    y = layernorm(x, gamma, beta, eps=1e-5)
    jax.block_until_ready(y)
    y_ref = _ref_layernorm(x, gamma, beta, eps=1e-5)
    assert jnp.allclose(y, y_ref, atol=1e-4, rtol=1e-4), "mismatch vs reference (small)"

    # 2) Larger batch: N=1568 -> four 392-row blocks, zero tail waste.
    xb = jax.random.normal(kx2, (8, 14, 14, 512), dtype=jnp.float32)
    yb = layernorm(xb, gamma, beta, eps=1e-5)
    jax.block_until_ready(yb)
    yb_ref = _ref_layernorm(xb, gamma, beta, eps=1e-5)
    assert jnp.allclose(yb, yb_ref, atol=1e-4, rtol=1e-4), "mismatch vs reference (tiled)"

    print("KERNEL_OK")
</pallas_src>

<mosaic_0001>
module attributes {stable_mosaic.version = 11 : i64} {
  func.func @layernorm_kernel(%arg0: i32, %arg1: memref<104x512xf32, #tpu.memory_space<vmem>>, %arg2: memref<1x512xf32, #tpu.memory_space<vmem>>, %arg3: memref<1x512xf32, #tpu.memory_space<vmem>>, %arg4: memref<104x512xf32, #tpu.memory_space<vmem>>) attributes {dimension_semantics = [#tpu.dimension_semantics<parallel>], iteration_bounds = array<i64: 2>, scalar_prefetch = 0 : i64, scratch_operands = 0 : i64, tpu.core_type = #tpu.core_type<tc>, window_params = [{transform_indices = @transform_0, window_bounds = array<i64: 104, 512>}, {pipeline_mode = #tpu.pipeline_mode<synchronous>, transform_indices = @transform_1, window_bounds = array<i64: 1, 512>}, {pipeline_mode = #tpu.pipeline_mode<synchronous>, transform_indices = @transform_2, window_bounds = array<i64: 1, 512>}, {transform_indices = @transform_3, window_bounds = array<i64: 104, 512>}]} {
    %c0 = arith.constant 0 : index
    %c0_0 = arith.constant 0 : index
    %0 = vector.load %arg1[%c0, %c0_0] : memref<104x512xf32, #tpu.memory_space<vmem>>, vector<104x512xf32>
    %cst = arith.constant dense<0.000000e+00> : vector<104xf32>
    %1 = vector.multi_reduction <add>, %0, %cst [1] : vector<104x512xf32> to vector<104xf32>
    %2 = vector.shape_cast %1 : vector<104xf32> to vector<104x1xf32>
    %3 = arith.mulf %0, %0 : vector<104x512xf32>
    %cst_1 = arith.constant dense<0.000000e+00> : vector<104xf32>
    %4 = vector.multi_reduction <add>, %3, %cst_1 [1] : vector<104x512xf32> to vector<104xf32>
    %5 = vector.shape_cast %4 : vector<104xf32> to vector<104x1xf32>
    %cst_2 = arith.constant 0.001953125 : f32
    %6 = vector.broadcast %cst_2 : f32 to vector<104x1xf32>
    %7 = arith.mulf %2, %6 : vector<104x1xf32>
    %cst_3 = arith.constant 0.001953125 : f32
    %8 = vector.broadcast %cst_3 : f32 to vector<104x1xf32>
    %9 = arith.mulf %5, %8 : vector<104x1xf32>
    %10 = arith.mulf %7, %7 : vector<104x1xf32>
    %11 = arith.subf %9, %10 : vector<104x1xf32>
    %cst_4 = arith.constant 0.000000e+00 : f32
    %12 = vector.broadcast %cst_4 : f32 to vector<104x1xf32>
    %13 = arith.maximumf %11, %12 : vector<104x1xf32>
    %cst_5 = arith.constant 9.99999974E-6 : f32
    %14 = vector.broadcast %cst_5 : f32 to vector<104x1xf32>
    %15 = arith.addf %13, %14 : vector<104x1xf32>
    %16 = math.rsqrt %15 : vector<104x1xf32>
    %c0_6 = arith.constant 0 : index
    %c0_7 = arith.constant 0 : index
    %17 = vector.load %arg2[%c0_6, %c0_7] : memref<1x512xf32, #tpu.memory_space<vmem>>, vector<1x512xf32>
    %c0_8 = arith.constant 0 : index
    %c0_9 = arith.constant 0 : index
    %18 = vector.load %arg3[%c0_8, %c0_9] : memref<1x512xf32, #tpu.memory_space<vmem>>, vector<1x512xf32>
    %19 = vector.broadcast %7 : vector<104x1xf32> to vector<104x512xf32>
    %20 = arith.subf %0, %19 : vector<104x512xf32>
    %21 = vector.broadcast %16 : vector<104x1xf32> to vector<104x512xf32>
    %22 = arith.mulf %20, %21 : vector<104x512xf32>
    %23 = vector.broadcast %17 : vector<1x512xf32> to vector<104x512xf32>
    %24 = arith.mulf %22, %23 : vector<104x512xf32>
    %25 = vector.broadcast %18 : vector<1x512xf32> to vector<104x512xf32>
    %26 = arith.addf %24, %25 : vector<104x512xf32>
    %c0_10 = arith.constant 0 : index
    %c0_11 = arith.constant 0 : index
    %27 = vector.load %arg4[%c0_10, %c0_11] : memref<104x512xf32, #tpu.memory_space<vmem>>, vector<104x512xf32>
    tpu.vector_store %arg4[%c0_10, %c0_11], %26 {strides = array<i32>} : memref<104x512xf32, #tpu.memory_space<vmem>>, vector<104x512xf32>,
    return
  }
  func.func @transform_0(%arg0: i32) -> (i32, i32) {
    %c0_i32 = arith.constant 0 : i32
    %c0_i32_0 = arith.constant 0 : i32
    return %arg0, %c0_i32 : i32, i32
  }
  func.func @transform_1(%arg0: i32) -> (i32, i32) {
    %c0_i32 = arith.constant 0 : i32
    %c0_i32_0 = arith.constant 0 : i32
    %c0_i32_1 = arith.constant 0 : i32
    return %c0_i32, %c0_i32_0 : i32, i32
  }
  func.func @transform_2(%arg0: i32) -> (i32, i32) {
    %c0_i32 = arith.constant 0 : i32
    %c0_i32_0 = arith.constant 0 : i32
    %c0_i32_1 = arith.constant 0 : i32
    return %c0_i32, %c0_i32_0 : i32, i32
  }
  func.func @transform_3(%arg0: i32) -> (i32, i32) {
    %c0_i32 = arith.constant 0 : i32
    %c0_i32_0 = arith.constant 0 : i32
    return %arg0, %c0_i32 : i32, i32
  }
}

</mosaic_0001>

<llo_original>
// kernel: tpu_custom_call.1
$region0: #{tpu_custom_call.1}
  #allocation0 [shape = 'u32[]', space=smem, size = 0x4, offset = 0x4, fixed_abs, tag = 'smem constant byte address 0x4 - core index']
  #allocation1 [shape = 'u32[144,128]{1,0:T(1,128)}', space=vmem, size = 0x12000, scoped, tag = 'internal scratch']
  %s0 = inlined_call_operand.hbm [shape: f32[196,512], index: 0, kind: input, shape index: {}]
  %s1 = inlined_call_operand.hbm [shape: f32[1,512], index: 1, kind: input, shape index: {}]
  %s2 = inlined_call_operand.hbm [shape: f32[1,512], index: 2, kind: input, shape index: {}]
  %s3 = inlined_call_operand.hbm [shape: f32[196,512], index: 3, kind: output, shape index: {}]
  %s4 = sld [smem:[#allocation0]]
  $region57: #{tpu_custom_call.1} parent=0
    _
  %s6 = ssub.s32 1, %s4
  %s7 = scalar_select 0, %s6, %s4
  $region1: #{tpu_custom_call.1} parent=0
    #allocation2 [shape = 'u8[425984]{0}', space=vmem, size = 0x68000, scoped, tag = 'input window, operand 0']
    #allocation3 [shape = 's32[2]{0}', space=sflag, size = 0x8, scoped, tag = 'scoped memory for tpu_custom_call.1']
    #allocation4 [shape = 's32[2]{0}', space=sflag, size = 0x8, scoped, tag = 'scoped memory for tpu_custom_call.1']
    #allocation5 [shape = 'u8[2048]{0}', space=vmem, size = 0x800, scoped, tag = 'input window, operand 1, single buffered']
    #allocation6 [shape = 's32[1]{0}', space=sflag, size = 0x4, scoped, tag = 'scoped memory for tpu_custom_call.1']
    #allocation7 [shape = 'u8[2048]{0}', space=vmem, size = 0x800, scoped, tag = 'input window, operand 2, single buffered']
    #allocation8 [shape = 'u8[425984]{0}', space=vmem, size = 0x68000, scoped, tag = 'output window, operand 0']
    %8 = vsyncpa [#allocation3], 0
    %s9 = scalar_lea.sflag [#allocation3], 1
    %10 = vsyncpa %s9, 0
    %11 = vsyncpa [#allocation6], 0
    %12 = vsyncpa [#allocation4], 0
    %s13 = scalar_lea.sflag [#allocation4], 1
    %14 = vsyncpa %s13, 0
    loop: start=0, step=1, limit=4
    $region2: #{tpu_custom_call.1} parent=1 // loop_pre_header
      _
    $region3: #{tpu_custom_call.1} parent=1 // loop_header
      %s16 = sphi 0, %s20
      %p17 = scmp.ge.s32.totalorder %s16, 4
      %s26 = sphi 0, %s28
      %s29 = sphi 0, %s26
      %s30 = sphi 0, %s29
      %s46 = sphi 0, %s30
      %s50 = sphi 0, %s50
      %s52 = sphi 0, %s50
      %s53 = sphi 0, %s52
      %s67 = sphi 0, %s53
      %s71 = sphi 0, %s71
      %s73 = sphi 0, %s71
      %s74 = sphi 0, %s73
      %s88 = sphi 0, %s74
      %s94 = sphi 0, %s96
      %s97 = sphi 0, %s94
      %s98 = sphi 0, %s97
      %s114 = sphi 0, %s98
    $region4: #{tpu_custom_call.1} parent=1 // loop_header_branch
      %19 = sbr.rel (%p17) target = $region8
    $region5: #{tpu_custom_call.1} parent=1 // loop_body
      %s21 = ssub.s32 %s16, 1
      %s22 = ssub.s32 %s16, 2
      %s23 = sadd.s32 %s16, 1
      %s24 = ssub.s32 %s16, %s23
      %p25 = scmp.eq.s32.totalorder %s24, 0
      %s27 = sadd.s32 %s26, 1
      %s28 = scalar_select %p25, %s26, %s27
      %p31 = pneg %p25
      %p32 = scmp.eq.s32.totalorder %s16, 1
      %p33 = por %p31, %p32
      %p34 = scmp.ne.s32.totalorder %s26, %s29
      %p35 = scmp.eq.s32.totalorder %s16, 0
      %p36 = por %p34, %p35
      %p37 = scmp.ne.s32.totalorder %s26, %s29
      %p38 = scmp.eq.s32.totalorder %s21, 1
      %p39 = por %p37, %p38
      %p40 = scmp.ne.s32.totalorder %s29, %s30
      %p41 = scmp.eq.s32.totalorder %s21, 0
      %p42 = por %p40, %p41
      %p43 = scmp.ne.s32.totalorder %s29, %s30
      %p44 = scmp.eq.s32.totalorder %s22, 1
      %p45 = por %p43, %p44
      %p47 = scmp.ne.s32.totalorder %s30, %s46
      %p48 = scmp.eq.s32.totalorder %s22, 0
      %p49 = por %p47, %p48
      %s51 = sadd.s32 %s50, 1
      %p54 = scmp.eq.s32.totalorder %s16, 1
      %p55 = scmp.ne.s32.totalorder %s50, %s52
      %p56 = scmp.eq.s32.totalorder %s16, 0
      %p57 = por %p55, %p56
      %p58 = scmp.ne.s32.totalorder %s50, %s52
      %p59 = scmp.eq.s32.totalorder %s21, 1
      %p60 = por %p58, %p59
      %p61 = scmp.ne.s32.totalorder %s52, %s53
      %p62 = scmp.eq.s32.totalorder %s21, 0
      %p63 = por %p61, %p62
      %p64 = scmp.ne.s32.totalorder %s52, %s53
      %p65 = scmp.eq.s32.totalorder %s22, 1
      %p66 = por %p64, %p65
      %p68 = scmp.ne.s32.totalorder %s53, %s67
      %p69 = scmp.eq.s32.totalorder %s22, 0
      %p70 = por %p68, %p69
      %s72 = sadd.s32 %s71, 1
      %p75 = scmp.eq.s32.totalorder %s16, 1
      %p76 = scmp.ne.s32.totalorder %s71, %s73
      %p77 = scmp.eq.s32.totalorder %s16, 0
      %p78 = por %p76, %p77
      %p79 = scmp.ne.s32.totalorder %s71, %s73
      %p80 = scmp.eq.s32.totalorder %s21, 1
      %p81 = por %p79, %p80
      %p82 = scmp.ne.s32.totalorder %s73, %s74
      %p83 = scmp.eq.s32.totalorder %s21, 0
      %p84 = por %p82, %p83
      %p85 = scmp.ne.s32.totalorder %s73, %s74
      %p86 = scmp.eq.s32.totalorder %s22, 1
      %p87 = por %p85, %p86
      %p89 = scmp.ne.s32.totalorder %s74, %s88
      %p90 = scmp.eq.s32.totalorder %s22, 0
      %p91 = por %p89, %p90
      %s92 = ssub.s32 %s16, %s23
      %p93 = scmp.eq.s32.totalorder %s92, 0
      %s95 = sadd.s32 %s94, 1
      %s96 = scalar_select %p93, %s94, %s95
      %p99 = pneg %p93
      %p100 = scmp.eq.s32.totalorder %s16, 1
      %p101 = por %p99, %p100
      %p102 = scmp.ne.s32.totalorder %s94, %s97
      %p103 = scmp.eq.s32.totalorder %s16, 0
      %p104 = por %p102, %p103
      %p105 = scmp.ne.s32.totalorder %s94, %s97
      %p106 = scmp.eq.s32.totalorder %s21, 1
      %p107 = por %p105, %p106
      %p108 = scmp.ne.s32.totalorder %s97, %s98
      %p109 = scmp.eq.s32.totalorder %s21, 0
      %p110 = por %p108, %p109
      %p111 = scmp.ne.s32.totalorder %s97, %s98
      %p112 = scmp.eq.s32.totalorder %s22, 1
      %p113 = por %p111, %p112
      %p115 = scmp.ne.s32.totalorder %s98, %s114
      %p116 = scmp.eq.s32.totalorder %s22, 0
      %p117 = por %p115, %p116
      %p118 = scmp.le.s32.totalorder 1, %s16
      %p119 = scmp.lt.s32.totalorder %s16, 3
      %p120 = pnand %p118, %p119
      %p121 = pneg %p120
      // Predicated region
      $region9: #{tpu_custom_call.1} parent=5 // pred_check
        _
      $region10: #{tpu_custom_call.1} parent=5 // pred_check_branch
        %123 = sbr.rel (%p120) target = $region12
      $region11: #{tpu_custom_call.1} parent=5 // pred_region
        %s124 = ssub.s32 %s16, 1
        // Predicated region
        $region13: #{tpu_custom_call.1} parent=11 // pred_check
          %p125 = pneg %p63
        $region14: #{tpu_custom_call.1} parent=11 // pred_check_branch
          %127 = sbr.rel (%p125) target = $region16
        $region15: #{tpu_custom_call.1} parent=11 // pred_region
          %s129 = ssub.s32 64, 64
          %130 = vsyncadd [#allocation6], %s129
          %s132 = sshll.u32 [#allocation5], 4
          %s133 = int_to_ptr.vmem [resolvable:$true] %s132
          %135 = dma.hbm_to_vmem [thread:$0]  %s1, 64, %s133, [#allocation6]
        $region16: #{tpu_custom_call.1} parent=11 // pred_fallthru
          _
        // Predicated region
        $region17: #{tpu_custom_call.1} parent=11 // pred_check
          %p136 = pneg %p84
        $region18: #{tpu_custom_call.1} parent=11 // pred_check_branch
          %138 = sbr.rel (%p136) target = $region20
        $region19: #{tpu_custom_call.1} parent=11 // pred_region
          %s140 = ssub.s32 64, 64
          %141 = vsyncadd [#allocation6], %s140
          %s143 = sshll.u32 [#allocation7], 4
          %s144 = int_to_ptr.vmem [resolvable:$true] %s143
          %146 = dma.hbm_to_vmem [thread:$0]  %s2, 64, %s144, [#allocation6]
        $region20: #{tpu_custom_call.1} parent=11 // pred_fallthru
          _
      $region12: #{tpu_custom_call.1} parent=5 // pred_fallthru
        _
      %p147 = scmp.lt.s32.totalorder %s16, 2
      // Predicated region
      $region21: #{tpu_custom_call.1} parent=5 // pred_check
        %p148 = pneg %p147
      $region22: #{tpu_custom_call.1} parent=5 // pred_check_branch
        %150 = sbr.rel (%p148) target = $region24
      $region23: #{tpu_custom_call.1} parent=5 // pred_region
        // Predicated region
        $region25: #{tpu_custom_call.1} parent=23 // pred_check
          %p151 = pneg %p36
        $region26: #{tpu_custom_call.1} parent=23 // pred_check_branch
          %153 = sbr.rel (%p151) target = $region28
        $region27: #{tpu_custom_call.1} parent=23 // pred_region
          %s154 = sand.u32 %s26, 1
          %s155 = scalar_lea.sflag [#allocation3], %s154
          %s156 = sand.u32 %s26, 1
          %s157 = smul.addr %s156, 416
          %s158 = scalar_lea.vmem [#allocation2], %s157
          %s159 = smul.u32 13, %s16
          %s160 = ssub.s32 25, %s159
          %p161 = scmp.lt.s32.totalorder %s160, 13
          %s162 = scalar_select %p161, %s160, 13
          %s163 = smul.u32 128, %s162
          %s164 = smul.u32 %s163, 4
          %s166 = ssub.s32 6656, %s164
          %167 = vsyncadd %s155, %s166
          %p168 = scmp.ne.s32.totalorder 0, %s164
          %s169 = smul.addr %s159, 4
          %s170 = smul.addr %s169, 128
          %s171 = scalar_lea.hbm %s0, %s170
          %s172 = smul.u32 32, %s162
          %s173 = sshll.u32 %s158, 4
          %s174 = int_to_ptr.vmem [resolvable:$true] %s173
          %s175 = sshll.u32 %s172, 4
          %179 = dma.hbm_to_vmem [thread:$0]  (%p168), %s171, %s175, %s174, %s155, 512, 512, 32
        $region28: #{tpu_custom_call.1} parent=23 // pred_fallthru
          _
      $region24: #{tpu_custom_call.1} parent=5 // pred_fallthru
        _
      %p180 = scmp.le.s32.totalorder 1, %s16
      %p181 = scmp.lt.s32.totalorder %s16, 3
      %p182 = pnand %p180, %p181
      %p183 = pneg %p182
      // Predicated region
      $region29: #{tpu_custom_call.1} parent=5 // pred_check
        _
      $region30: #{tpu_custom_call.1} parent=5 // pred_check_branch
        %185 = sbr.rel (%p182) target = $region32
      $region31: #{tpu_custom_call.1} parent=5 // pred_region
        %s186 = ssub.s32 %s16, 1
        %s187 = sand.u32 %s29, 1
        %s188 = scalar_lea.sflag [#allocation3], %s187
        %s189 = sand.u32 %s29, 1
        %s190 = smul.addr %s189, 416
        %s191 = scalar_lea.vmem [#allocation2], %s190
        // Predicated region
        $region33: #{tpu_custom_call.1} parent=31 // pred_check
          %p192 = pneg %p42
        $region34: #{tpu_custom_call.1} parent=31 // pred_check_branch
          %194 = sbr.rel (%p192) target = $region36
        $region35: #{tpu_custom_call.1} parent=31 // pred_region
          %195 = dma.done %s188, 6656
        $region36: #{tpu_custom_call.1} parent=31 // pred_fallthru
          _
        // Predicated region
        $region37: #{tpu_custom_call.1} parent=31 // pred_check
          %p196 = pneg %p63
        $region38: #{tpu_custom_call.1} parent=31 // pred_check_branch
          %198 = sbr.rel (%p196) target = $region40
        $region39: #{tpu_custom_call.1} parent=31 // pred_region
          %199 = dma.done [#allocation6], 64
        $region40: #{tpu_custom_call.1} parent=31 // pred_fallthru
          _
        // Predicated region
        $region41: #{tpu_custom_call.1} parent=31 // pred_check
          %p200 = pneg %p84
        $region42: #{tpu_custom_call.1} parent=31 // pred_check_branch
          %202 = sbr.rel (%p200) target = $region44
        $region43: #{tpu_custom_call.1} parent=31 // pred_region
          %203 = dma.done [#allocation6], 64
        $region44: #{tpu_custom_call.1} parent=31 // pred_fallthru
          _
        %s204 = sand.u32 %s29, 1
        %s205 = scalar_lea.sflag [#allocation3], %s204
        %s206 = sand.u32 %s29, 1
        %s207 = smul.addr %s206, 416
        %s208 = scalar_lea.vmem [#allocation2], %s207
        %p209 = pneg %p42
        %p210 = pneg %p39
        %p211 = pneg %p63
        %p212 = pneg %p60
        %p213 = pneg %p84
        %p214 = pneg %p81
        %p215 = pneg %p110
        %p216 = pneg %p107
        %s217 = sand.u32 %s97, 1
        %s218 = scalar_lea.sflag [#allocation4], %s217
        %s219 = sand.u32 %s97, 1
        %s220 = smul.addr %s219, 416
        %s221 = scalar_lea.vmem [#allocation8], %s220
        %s222 = smul.u32 13, %s21
        %s223 = ssub.s32 25, %s222
        %p224 = scmp.lt.s32.totalorder %s223, 13
        %s225 = scalar_select %p224, %s223, 13
        %s226 = smul.u32 128, %s225
        %s227 = smul.u32 %s226, 4
        %s228 = smul.u32 13, %s21
        %s229 = ssub.s32 25, %s228
        %p230 = scmp.lt.s32.totalorder %s229, 13
        %s231 = scalar_select %p230, %s229, 13
        %s232 = smul.u32 128, %s231
        %s233 = smul.u32 %s232, 4
        %v234 = vld [vmem:[%s191] sm:$0xff]
        %v235 = vld [vmem:[%s191 + $0x8] sm:$0xff]
        %v236 = vld [vmem:[%s191 + $0x10] sm:$0xff]
        %v237 = vld [vmem:[%s191 + $0x18] sm:$0xff]
        %v238 = vld [vmem:[%s191 + $0x20] sm:$0xff]
        %v239 = vld [vmem:[%s191 + $0x28] sm:$0xff]
        %v240 = vld [vmem:[%s191 + $0x30] sm:$0xff]
        %v241 = vld [vmem:[%s191 + $0x38] sm:$0xff]
        %v242 = vld [vmem:[%s191 + $0x40] sm:$0xff]
        %v243 = vld [vmem:[%s191 + $0x48] sm:$0xff]
        %v244 = vld [vmem:[%s191 + $0x50] sm:$0xff]
        %v245 = vld [vmem:[%s191 + $0x58] sm:$0xff]
        %v246 = vld [vmem:[%s191 + $0x60] sm:$0xff]
        %v247 = vld [vmem:[%s191 + $0x68] sm:$0xff]
        %v248 = vld [vmem:[%s191 + $0x70] sm:$0xff]
        %v249 = vld [vmem:[%s191 + $0x78] sm:$0xff]
        %v250 = vld [vmem:[%s191 + $0x80] sm:$0xff]
        %v251 = vld [vmem:[%s191 + $0x88] sm:$0xff]
        %v252 = vld [vmem:[%s191 + $0x90] sm:$0xff]
        %v253 = vld [vmem:[%s191 + $0x98] sm:$0xff]
        %v254 = vld [vmem:[%s191 + $0xa0] sm:$0xff]
        %v255 = vld [vmem:[%s191 + $0xa8] sm:$0xff]
        %v256 = vld [vmem:[%s191 + $0xb0] sm:$0xff]
        %v257 = vld [vmem:[%s191 + $0xb8] sm:$0xff]
        %v258 = vld [vmem:[%s191 + $0xc0] sm:$0xff]
        %v259 = vld [vmem:[%s191 + $0xc8] sm:$0xff]
        %v260 = vld [vmem:[%s191 + $0xd0] sm:$0xff]
        %v261 = vld [vmem:[%s191 + $0xd8] sm:$0xff]
        %v262 = vld [vmem:[%s191 + $0xe0] sm:$0xff]
        %v263 = vld [vmem:[%s191 + $0xe8] sm:$0xff]
        %v264 = vld [vmem:[%s191 + $0xf0] sm:$0xff]
        %v265 = vld [vmem:[%s191 + $0xf8] sm:$0xff]
        %v266 = vld [vmem:[%s191 + $0x100] sm:$0xff]
        %v267 = vld [vmem:[%s191 + $0x108] sm:$0xff]
        %v268 = vld [vmem:[%s191 + $0x110] sm:$0xff]
        %v269 = vld [vmem:[%s191 + $0x118] sm:$0xff]
        %v270 = vld [vmem:[%s191 + $0x120] sm:$0xff]
        %v271 = vld [vmem:[%s191 + $0x128] sm:$0xff]
        %v272 = vld [vmem:[%s191 + $0x130] sm:$0xff]
        %v273 = vld [vmem:[%s191 + $0x138] sm:$0xff]
        %v274 = vld [vmem:[%s191 + $0x140] sm:$0xff]
        %v275 = vld [vmem:[%s191 + $0x148] sm:$0xff]
        %v276 = vld [vmem:[%s191 + $0x150] sm:$0xff]
        %v277 = vld [vmem:[%s191 + $0x158] sm:$0xff]
        %v278 = vld [vmem:[%s191 + $0x160] sm:$0xff]
        %v279 = vld [vmem:[%s191 + $0x168] sm:$0xff]
        %v280 = vld [vmem:[%s191 + $0x170] sm:$0xff]
        %v281 = vld [vmem:[%s191 + $0x178] sm:$0xff]
        %v282 = vld [vmem:[%s191 + $0x180] sm:$0xff]
        %v283 = vld [vmem:[%s191 + $0x188] sm:$0xff]
        %v284 = vld [vmem:[%s191 + $0x190] sm:$0xff]
        %v285 = vld [vmem:[%s191 + $0x198] sm:$0xff]
        %v286 = vadd.f32 %v234, %v235
        %v287 = vadd.f32 %v286, %v236
        %v288 = vadd.f32 %v287, %v237
        %289 = vadd.xlane.f32.xlu0 %v288
        %v290 = vpop.xlane.xlu0 %289
        %v291 = vadd.f32 %v238, %v239
        %v292 = vadd.f32 %v291, %v240
        %v293 = vadd.f32 %v292, %v241
        %294 = vadd.xlane.f32.xlu0 %v293
        %v295 = vpop.xlane.xlu0 %294
        %v296 = vadd.f32 %v242, %v243
        %v297 = vadd.f32 %v296, %v244
        %v298 = vadd.f32 %v297, %v245
        %299 = vadd.xlane.f32.xlu0 %v298
        %v300 = vpop.xlane.xlu0 %299
        %v301 = vadd.f32 %v246, %v247
        %v302 = vadd.f32 %v301, %v248
        %v303 = vadd.f32 %v302, %v249
        %304 = vadd.xlane.f32.xlu0 %v303
        %v305 = vpop.xlane.xlu0 %304
        %v306 = vadd.f32 %v250, %v251
        %v307 = vadd.f32 %v306, %v252
        %v308 = vadd.f32 %v307, %v253
        %309 = vadd.xlane.f32.xlu0 %v308
        %v310 = vpop.xlane.xlu0 %309
        %v311 = vadd.f32 %v254, %v255
        %v312 = vadd.f32 %v311, %v256
        %v313 = vadd.f32 %v312, %v257
        %314 = vadd.xlane.f32.xlu0 %v313
        %v315 = vpop.xlane.xlu0 %314
        %v316 = vadd.f32 %v258, %v259
        %v317 = vadd.f32 %v316, %v260
        %v318 = vadd.f32 %v317, %v261
        %319 = vadd.xlane.f32.xlu0 %v318
        %v320 = vpop.xlane.xlu0 %319
        %v321 = vadd.f32 %v262, %v263
        %v322 = vadd.f32 %v321, %v264
        %v323 = vadd.f32 %v322, %v265
        %324 = vadd.xlane.f32.xlu0 %v323
        %v325 = vpop.xlane.xlu0 %324
        %v326 = vadd.f32 %v266, %v267
        %v327 = vadd.f32 %v326, %v268
        %v328 = vadd.f32 %v327, %v269
        %329 = vadd.xlane.f32.xlu0 %v328
        %v330 = vpop.xlane.xlu0 %329
        %v331 = vadd.f32 %v270, %v271
        %v332 = vadd.f32 %v331, %v272
        %v333 = vadd.f32 %v332, %v273
        %334 = vadd.xlane.f32.xlu0 %v333
        %v335 = vpop.xlane.xlu0 %334
        %v336 = vadd.f32 %v274, %v275
        %v337 = vadd.f32 %v336, %v276
        %v338 = vadd.f32 %v337, %v277
        %339 = vadd.xlane.f32.xlu0 %v338
        %v340 = vpop.xlane.xlu0 %339
        %v341 = vadd.f32 %v278, %v279
        %v342 = vadd.f32 %v341, %v280
        %v343 = vadd.f32 %v342, %v281
        %344 = vadd.xlane.f32.xlu0 %v343
        %v345 = vpop.xlane.xlu0 %344
        %v346 = vadd.f32 %v282, %v283
        %v347 = vadd.f32 %v346, %v284
        %v348 = vadd.f32 %v347, %v285
        %349 = vadd.xlane.f32.xlu0 %v348
        %v350 = vpop.xlane.xlu0 %349
        %v351 = vmul.f32 %v234, %v234
        %v352 = vmul.f32 %v235, %v235
        %v353 = vmul.f32 %v236, %v236
        %v354 = vmul.f32 %v237, %v237
        %v355 = vmul.f32 %v238, %v238
        %v356 = vmul.f32 %v239, %v239
        %v357 = vmul.f32 %v240, %v240
        %v358 = vmul.f32 %v241, %v241
        %v359 = vmul.f32 %v242, %v242
        %v360 = vmul.f32 %v243, %v243
        %v361 = vmul.f32 %v244, %v244
        %v362 = vmul.f32 %v245, %v245
        %v363 = vmul.f32 %v246, %v246
        %v364 = vmul.f32 %v247, %v247
        %v365 = vmul.f32 %v248, %v248
        %v366 = vmul.f32 %v249, %v249
        %v367 = vmul.f32 %v250, %v250
        %v368 = vmul.f32 %v251, %v251
        %v369 = vmul.f32 %v252, %v252
        %v370 = vmul.f32 %v253, %v253
        %v371 = vmul.f32 %v254, %v254
        %v372 = vmul.f32 %v255, %v255
        %v373 = vmul.f32 %v256, %v256
        %v374 = vmul.f32 %v257, %v257
        %v375 = vmul.f32 %v258, %v258
        %v376 = vmul.f32 %v259, %v259
        %v377 = vmul.f32 %v260, %v260
        %v378 = vmul.f32 %v261, %v261
        %v379 = vmul.f32 %v262, %v262
        %v380 = vmul.f32 %v263, %v263
        %v381 = vmul.f32 %v264, %v264
        %v382 = vmul.f32 %v265, %v265
        %v383 = vmul.f32 %v266, %v266
        %v384 = vmul.f32 %v267, %v267
        %v385 = vmul.f32 %v268, %v268
        %v386 = vmul.f32 %v269, %v269
        %v387 = vmul.f32 %v270, %v270
        %v388 = vmul.f32 %v271, %v271
        %v389 = vmul.f32 %v272, %v272
        %v390 = vmul.f32 %v273, %v273
        %v391 = vmul.f32 %v274, %v274
        %v392 = vmul.f32 %v275, %v275
        %v393 = vmul.f32 %v276, %v276
        %v394 = vmul.f32 %v277, %v277
        %v395 = vmul.f32 %v278, %v278
        %v396 = vmul.f32 %v279, %v279
        %v397 = vmul.f32 %v280, %v280
        %v398 = vmul.f32 %v281, %v281
        %v399 = vmul.f32 %v282, %v282
        %v400 = vmul.f32 %v283, %v283
        %v401 = vmul.f32 %v284, %v284
        %v402 = vmul.f32 %v285, %v285
        %v403 = vadd.f32 %v351, %v352
        %v404 = vadd.f32 %v403, %v353
        %v405 = vadd.f32 %v404, %v354
        %406 = vadd.xlane.f32.xlu0 %v405
        %v407 = vpop.xlane.xlu0 %406
        %v408 = vadd.f32 %v355, %v356
        %v409 = vadd.f32 %v408, %v357
        %v410 = vadd.f32 %v409, %v358
        %411 = vadd.xlane.f32.xlu0 %v410
        %v412 = vpop.xlane.xlu0 %411
        %v413 = vadd.f32 %v359, %v360
        %v414 = vadd.f32 %v413, %v361
        %v415 = vadd.f32 %v414, %v362
        %416 = vadd.xlane.f32.xlu0 %v415
        %v417 = vpop.xlane.xlu0 %416
        %v418 = vadd.f32 %v363, %v364
        %v419 = vadd.f32 %v418, %v365
        %v420 = vadd.f32 %v419, %v366
        %421 = vadd.xlane.f32.xlu0 %v420
        %v422 = vpop.xlane.xlu0 %421
        %v423 = vadd.f32 %v367, %v368
        %v424 = vadd.f32 %v423, %v369
        %v425 = vadd.f32 %v424, %v370
        %426 = vadd.xlane.f32.xlu0 %v425
        %v427 = vpop.xlane.xlu0 %426
        %v428 = vadd.f32 %v371, %v372
        %v429 = vadd.f32 %v428, %v373
        %v430 = vadd.f32 %v429, %v374
        %431 = vadd.xlane.f32.xlu0 %v430
        %v432 = vpop.xlane.xlu0 %431
        %v433 = vadd.f32 %v375, %v376
        %v434 = vadd.f32 %v433, %v377
        %v435 = vadd.f32 %v434, %v378
        %436 = vadd.xlane.f32.xlu0 %v435
        %v437 = vpop.xlane.xlu0 %436
        %v438 = vadd.f32 %v379, %v380
        %v439 = vadd.f32 %v438, %v381
        %v440 = vadd.f32 %v439, %v382
        %441 = vadd.xlane.f32.xlu0 %v440
        %v442 = vpop.xlane.xlu0 %441
        %v443 = vadd.f32 %v383, %v384
        %v444 = vadd.f32 %v443, %v385
        %v445 = vadd.f32 %v444, %v386
        %446 = vadd.xlane.f32.xlu0 %v445
        %v447 = vpop.xlane.xlu0 %446
        %v448 = vadd.f32 %v387, %v388
        %v449 = vadd.f32 %v448, %v389
        %v450 = vadd.f32 %v449, %v390
        %451 = vadd.xlane.f32.xlu0 %v450
        %v452 = vpop.xlane.xlu0 %451
        %v453 = vadd.f32 %v391, %v392
        %v454 = vadd.f32 %v453, %v393
        %v455 = vadd.f32 %v454, %v394
        %456 = vadd.xlane.f32.xlu0 %v455
        %v457 = vpop.xlane.xlu0 %456
        %v458 = vadd.f32 %v395, %v396
        %v459 = vadd.f32 %v458, %v397
        %v460 = vadd.f32 %v459, %v398
        %461 = vadd.xlane.f32.xlu0 %v460
        %v462 = vpop.xlane.xlu0 %461
        %v463 = vadd.f32 %v399, %v400
        %v464 = vadd.f32 %v463, %v401
        %v465 = vadd.f32 %v464, %v402
        %466 = vadd.xlane.f32.xlu0 %v465
        %v467 = vpop.xlane.xlu0 %466
        %v468 = vmul.f32 %v290, 0.001953125
        %v469 = vmul.f32 %v295, 0.001953125
        %v470 = vmul.f32 %v300, 0.001953125
        %v471 = vmul.f32 %v305, 0.001953125
        %v472 = vmul.f32 %v310, 0.001953125
        %v473 = vmul.f32 %v315, 0.001953125
        %v474 = vmul.f32 %v320, 0.001953125
        %v475 = vmul.f32 %v325, 0.001953125
        %v476 = vmul.f32 %v330, 0.001953125
        %v477 = vmul.f32 %v335, 0.001953125
        %v478 = vmul.f32 %v340, 0.001953125
        %v479 = vmul.f32 %v345, 0.001953125
        %v480 = vmul.f32 %v350, 0.001953125
        %v481 = vmul.f32 %v407, 0.001953125
        %v482 = vmul.f32 %v412, 0.001953125
        %v483 = vmul.f32 %v417, 0.001953125
        %v484 = vmul.f32 %v422, 0.001953125
        %v485 = vmul.f32 %v427, 0.001953125
        %v486 = vmul.f32 %v432, 0.001953125
        %v487 = vmul.f32 %v437, 0.001953125
        %v488 = vmul.f32 %v442, 0.001953125
        %v489 = vmul.f32 %v447, 0.001953125
        %v490 = vmul.f32 %v452, 0.001953125
        %v491 = vmul.f32 %v457, 0.001953125
        %v492 = vmul.f32 %v462, 0.001953125
        %v493 = vmul.f32 %v467, 0.001953125
        %v494 = vmul.f32 %v468, %v468
        %v495 = vmul.f32 %v469, %v469
        %v496 = vmul.f32 %v470, %v470
        %v497 = vmul.f32 %v471, %v471
        %v498 = vmul.f32 %v472, %v472
        %v499 = vmul.f32 %v473, %v473
        %v500 = vmul.f32 %v474, %v474
        %v501 = vmul.f32 %v475, %v475
        %v502 = vmul.f32 %v476, %v476
        %v503 = vmul.f32 %v477, %v477
        %v504 = vmul.f32 %v478, %v478
        %v505 = vmul.f32 %v479, %v479
        %v506 = vmul.f32 %v480, %v480
        %v507 = vsub.f32 %v481, %v494
        %v508 = vsub.f32 %v482, %v495
        %v509 = vsub.f32 %v483, %v496
        %v510 = vsub.f32 %v484, %v497
        %v511 = vsub.f32 %v485, %v498
        %v512 = vsub.f32 %v486, %v499
        %v513 = vsub.f32 %v487, %v500
        %v514 = vsub.f32 %v488, %v501
        %v515 = vsub.f32 %v489, %v502
        %v516 = vsub.f32 %v490, %v503
        %v517 = vsub.f32 %v491, %v504
        %v518 = vsub.f32 %v492, %v505
        %v519 = vsub.f32 %v493, %v506
        %v520 = vmax.f32 %v507, 0.0
        %v521 = vmax.f32 %v508, 0.0
        %v522 = vmax.f32 %v509, 0.0
        %v523 = vmax.f32 %v510, 0.0
        %v524 = vmax.f32 %v511, 0.0
        %v525 = vmax.f32 %v512, 0.0
        %v526 = vmax.f32 %v513, 0.0
        %v527 = vmax.f32 %v514, 0.0
        %v528 = vmax.f32 %v515, 0.0
        %v529 = vmax.f32 %v516, 0.0
        %v530 = vmax.f32 %v517, 0.0
        %v531 = vmax.f32 %v518, 0.0
        %v532 = vmax.f32 %v519, 0.0
        %v533 = vadd.f32 %v520, 1e-05
        %v534 = vadd.f32 %v521, 1e-05
        %v535 = vadd.f32 %v522, 1e-05
        %v536 = vadd.f32 %v523, 1e-05
        %v537 = vadd.f32 %v524, 1e-05
        %v538 = vadd.f32 %v525, 1e-05
        %v539 = vadd.f32 %v526, 1e-05
        %v540 = vadd.f32 %v527, 1e-05
        %v541 = vadd.f32 %v528, 1e-05
        %v542 = vadd.f32 %v529, 1e-05
        %v543 = vadd.f32 %v530, 1e-05
        %v544 = vadd.f32 %v531, 1e-05
        %v545 = vadd.f32 %v532, 1e-05
        %v546 = vrsqrt.pop %v533
        %v547 = vrsqrt.pop %v534
        %v548 = vrsqrt.pop %v535
        %v549 = vrsqrt.pop %v536
        %v550 = vrsqrt.pop %v537
        %v551 = vrsqrt.pop %v538
        %v552 = vrsqrt.pop %v539
        %v553 = vrsqrt.pop %v540
        %v554 = vrsqrt.pop %v541
        %v555 = vrsqrt.pop %v542
        %v556 = vrsqrt.pop %v543
        %v557 = vrsqrt.pop %v544
        %v558 = vrsqrt.pop %v545
        %v559 = vld [vmem:[#allocation5] sm:$0xf]
        %v560 = vld [vmem:[#allocation7] sm:$0xf]
        %v561 = vsub.f32 %v234, %v468
        %v562 = vsub.f32 %v235, %v468
        %v563 = vsub.f32 %v236, %v468
        %v564 = vsub.f32 %v237, %v468
        %v565 = vsub.f32 %v238, %v469
        %v566 = vsub.f32 %v239, %v469
        %v567 = vsub.f32 %v240, %v469
        %v568 = vsub.f32 %v241, %v469
        %v569 = vsub.f32 %v242, %v470
        %v570 = vsub.f32 %v243, %v470
        %v571 = vsub.f32 %v244, %v470
        %v572 = vsub.f32 %v245, %v470
        %v573 = vsub.f32 %v246, %v471
        %v574 = vsub.f32 %v247, %v471
        %v575 = vsub.f32 %v248, %v471
        %v576 = vsub.f32 %v249, %v471
        %v577 = vsub.f32 %v250, %v472
        %v578 = vsub.f32 %v251, %v472
        %v579 = vsub.f32 %v252, %v472
        %v580 = vsub.f32 %v253, %v472
        %v581 = vsub.f32 %v254, %v473
        %v582 = vsub.f32 %v255, %v473
        %v583 = vsub.f32 %v256, %v473
        %v584 = vsub.f32 %v257, %v473
        %v585 = vsub.f32 %v258, %v474
        %v586 = vsub.f32 %v259, %v474
        %v587 = vsub.f32 %v260, %v474
        %v588 = vsub.f32 %v261, %v474
        %v589 = vsub.f32 %v262, %v475
        %v590 = vsub.f32 %v263, %v475
        %v591 = vsub.f32 %v264, %v475
        %v592 = vsub.f32 %v265, %v475
        %v593 = vsub.f32 %v266, %v476
        %v594 = vsub.f32 %v267, %v476
        %v595 = vsub.f32 %v268, %v476
        %v596 = vsub.f32 %v269, %v476
        %v597 = vsub.f32 %v270, %v477
        %v598 = vsub.f32 %v271, %v477
        %v599 = vsub.f32 %v272, %v477
        %v600 = vsub.f32 %v273, %v477
        %v601 = vsub.f32 %v274, %v478
        %v602 = vsub.f32 %v275, %v478
        %v603 = vsub.f32 %v276, %v478
        %v604 = vsub.f32 %v277, %v478
        %v605 = vsub.f32 %v278, %v479
        %v606 = vsub.f32 %v279, %v479
        %v607 = vsub.f32 %v280, %v479
        %v608 = vsub.f32 %v281, %v479
        %v609 = vsub.f32 %v282, %v480
        %v610 = vsub.f32 %v283, %v480
        %v611 = vsub.f32 %v284, %v480
        %v612 = vsub.f32 %v285, %v480
        %v613 = vmul.f32 %v561, %v546
        %v614 = vmul.f32 %v562, %v546
        %v615 = vmul.f32 %v563, %v546
        %v616 = vmul.f32 %v564, %v546
        %v617 = vmul.f32 %v565, %v547
        %v618 = vmul.f32 %v566, %v547
        %v619 = vmul.f32 %v567, %v547
        %v620 = vmul.f32 %v568, %v547
        %v621 = vmul.f32 %v569, %v548
        %v622 = vmul.f32 %v570, %v548
        %v623 = vmul.f32 %v571, %v548
        %v624 = vmul.f32 %v572, %v548
        %v625 = vmul.f32 %v573, %v549
        %v626 = vmul.f32 %v574, %v549
        %v627 = vmul.f32 %v575, %v549
        %v628 = vmul.f32 %v576, %v549
        %v629 = vmul.f32 %v577, %v550
        %v630 = vmul.f32 %v578, %v550
        %v631 = vmul.f32 %v579, %v550
        %v632 = vmul.f32 %v580, %v550
        %v633 = vmul.f32 %v581, %v551
        %v634 = vmul.f32 %v582, %v551
        %v635 = vmul.f32 %v583, %v551
        %v636 = vmul.f32 %v584, %v551
        %v637 = vmul.f32 %v585, %v552
        %v638 = vmul.f32 %v586, %v552
        %v639 = vmul.f32 %v587, %v552
        %v640 = vmul.f32 %v588, %v552
        %v641 = vmul.f32 %v589, %v553
        %v642 = vmul.f32 %v590, %v553
        %v643 = vmul.f32 %v591, %v553
        %v644 = vmul.f32 %v592, %v553
        %v645 = vmul.f32 %v593, %v554
        %v646 = vmul.f32 %v594, %v554
        %v647 = vmul.f32 %v595, %v554
        %v648 = vmul.f32 %v596, %v554
        %v649 = vmul.f32 %v597, %v555
        %v650 = vmul.f32 %v598, %v555
        %v651 = vmul.f32 %v599, %v555
        %v652 = vmul.f32 %v600, %v555
        %v653 = vmul.f32 %v601, %v556
        %v654 = vmul.f32 %v602, %v556
        %v655 = vmul.f32 %v603, %v556
        %v656 = vmul.f32 %v604, %v556
        %v657 = vmul.f32 %v605, %v557
        %v658 = vmul.f32 %v606, %v557
        %v659 = vmul.f32 %v607, %v557
        %v660 = vmul.f32 %v608, %v557
        %v661 = vmul.f32 %v609, %v558
        %v662 = vmul.f32 %v610, %v558
        %v663 = vmul.f32 %v611, %v558
        %v664 = vmul.f32 %v612, %v558
        %v666 = vlaneseq
        %v667 = vshrl.u32 %v666, 7
        %v668 = vsub.s32 0, %v667
        %v669 = vrot.slane %v559, %v668
        %v670 = vlaneseq
        %v671 = vshrl.u32 %v670, 7
        %v672 = vsub.s32 1, %v671
        %v673 = vrot.slane %v559, %v672
        %v674 = vlaneseq
        %v675 = vshrl.u32 %v674, 7
        %v676 = vsub.s32 2, %v675
        %v677 = vrot.slane %v559, %v676
        %v678 = vlaneseq
        %v679 = vshrl.u32 %v678, 7
        %v680 = vsub.s32 3, %v679
        %v681 = vrot.slane %v559, %v680
        %v686 = vmul.f32 %v613, %v669
        %v687 = vmul.f32 %v614, %v673
        %v688 = vmul.f32 %v615, %v677
        %v689 = vmul.f32 %v616, %v681
        %v690 = vmul.f32 %v617, %v669
        %v691 = vmul.f32 %v618, %v673
        %v692 = vmul.f32 %v619, %v677
        %v693 = vmul.f32 %v620, %v681
        %v694 = vmul.f32 %v621, %v669
        %v695 = vmul.f32 %v622, %v673
        %v696 = vmul.f32 %v623, %v677
        %v697 = vmul.f32 %v624, %v681
        %v698 = vmul.f32 %v625, %v669
        %v699 = vmul.f32 %v626, %v673
        %v700 = vmul.f32 %v627, %v677
        %v701 = vmul.f32 %v628, %v681
        %v702 = vmul.f32 %v629, %v669
        %v703 = vmul.f32 %v630, %v673
        %v704 = vmul.f32 %v631, %v677
        %v705 = vmul.f32 %v632, %v681
        %v706 = vmul.f32 %v633, %v669
        %v707 = vmul.f32 %v634, %v673
        %v708 = vmul.f32 %v635, %v677
        %v709 = vmul.f32 %v636, %v681
        %v710 = vmul.f32 %v637, %v669
        %v711 = vmul.f32 %v638, %v673
        %v712 = vmul.f32 %v639, %v677
        %v713 = vmul.f32 %v640, %v681
        %v714 = vmul.f32 %v641, %v669
        %v715 = vmul.f32 %v642, %v673
        %v716 = vmul.f32 %v643, %v677
        %v717 = vmul.f32 %v644, %v681
        %v718 = vmul.f32 %v645, %v669
        %v719 = vmul.f32 %v646, %v673
        %v720 = vmul.f32 %v647, %v677
        %v721 = vmul.f32 %v648, %v681
        %v722 = vmul.f32 %v649, %v669
        %v723 = vmul.f32 %v650, %v673
        %v724 = vmul.f32 %v651, %v677
        %v725 = vmul.f32 %v652, %v681
        %v726 = vmul.f32 %v653, %v669
        %v727 = vmul.f32 %v654, %v673
        %v728 = vmul.f32 %v655, %v677
        %v729 = vmul.f32 %v656, %v681
        %v730 = vmul.f32 %v657, %v669
        %v731 = vmul.f32 %v658, %v673
        %v732 = vmul.f32 %v659, %v677
        %v733 = vmul.f32 %v660, %v681
        %v734 = vmul.f32 %v661, %v669
        %v735 = vmul.f32 %v662, %v673
        %v736 = vmul.f32 %v663, %v677
        %v737 = vmul.f32 %v664, %v681
        %v739 = vlaneseq
        %v740 = vshrl.u32 %v739, 7
        %v741 = vsub.s32 0, %v740
        %v742 = vrot.slane %v560, %v741
        %v743 = vlaneseq
        %v744 = vshrl.u32 %v743, 7
        %v745 = vsub.s32 1, %v744
        %v746 = vrot.slane %v560, %v745
        %v747 = vlaneseq
        %v748 = vshrl.u32 %v747, 7
        %v749 = vsub.s32 2, %v748
        %v750 = vrot.slane %v560, %v749
        %v751 = vlaneseq
        %v752 = vshrl.u32 %v751, 7
        %v753 = vsub.s32 3, %v752
        %v754 = vrot.slane %v560, %v753
        %v759 = vadd.f32 %v686, %v742
        %v760 = vadd.f32 %v687, %v746
        %v761 = vadd.f32 %v688, %v750
        %v762 = vadd.f32 %v689, %v754
        %v763 = vadd.f32 %v690, %v742
        %v764 = vadd.f32 %v691, %v746
        %v765 = vadd.f32 %v692, %v750
        %v766 = vadd.f32 %v693, %v754
        %v767 = vadd.f32 %v694, %v742
        %v768 = vadd.f32 %v695, %v746
        %v769 = vadd.f32 %v696, %v750
        %v770 = vadd.f32 %v697, %v754
        %v771 = vadd.f32 %v698, %v742
        %v772 = vadd.f32 %v699, %v746
        %v773 = vadd.f32 %v700, %v750
        %v774 = vadd.f32 %v701, %v754
        %v775 = vadd.f32 %v702, %v742
        %v776 = vadd.f32 %v703, %v746
        %v777 = vadd.f32 %v704, %v750
        %v778 = vadd.f32 %v705, %v754
        %v779 = vadd.f32 %v706, %v742
        %v780 = vadd.f32 %v707, %v746
        %v781 = vadd.f32 %v708, %v750
        %v782 = vadd.f32 %v709, %v754
        %v783 = vadd.f32 %v710, %v742
        %v784 = vadd.f32 %v711, %v746
        %v785 = vadd.f32 %v712, %v750
        %v786 = vadd.f32 %v713, %v754
        %v787 = vadd.f32 %v714, %v742
        %v788 = vadd.f32 %v715, %v746
        %v789 = vadd.f32 %v716, %v750
        %v790 = vadd.f32 %v717, %v754
        %v791 = vadd.f32 %v718, %v742
        %v792 = vadd.f32 %v719, %v746
        %v793 = vadd.f32 %v720, %v750
        %v794 = vadd.f32 %v721, %v754
        %v795 = vadd.f32 %v722, %v742
        %v796 = vadd.f32 %v723, %v746
        %v797 = vadd.f32 %v724, %v750
        %v798 = vadd.f32 %v725, %v754
        %v799 = vadd.f32 %v726, %v742
        %v800 = vadd.f32 %v727, %v746
        %v801 = vadd.f32 %v728, %v750
        %v802 = vadd.f32 %v729, %v754
        %v803 = vadd.f32 %v730, %v742
        %v804 = vadd.f32 %v731, %v746
        %v805 = vadd.f32 %v732, %v750
        %v806 = vadd.f32 %v733, %v754
        %v807 = vadd.f32 %v734, %v742
        %v808 = vadd.f32 %v735, %v746
        %v809 = vadd.f32 %v736, %v750
        %v810 = vadd.f32 %v737, %v754
        %811 = vst [vmem:[%s221] sm:$0xff] %v759
        %812 = vst [vmem:[%s221 + $0x8] sm:$0xff] %v760
        %813 = vst [vmem:[%s221 + $0x10] sm:$0xff] %v761
        %814 = vst [vmem:[%s221 + $0x18] sm:$0xff] %v762
        %815 = vst [vmem:[%s221 + $0x20] sm:$0xff] %v763
        %816 = vst [vmem:[%s221 + $0x28] sm:$0xff] %v764
        %817 = vst [vmem:[%s221 + $0x30] sm:$0xff] %v765
        %818 = vst [vmem:[%s221 + $0x38] sm:$0xff] %v766
        %819 = vst [vmem:[%s221 + $0x40] sm:$0xff] %v767
        %820 = vst [vmem:[%s221 + $0x48] sm:$0xff] %v768
        %821 = vst [vmem:[%s221 + $0x50] sm:$0xff] %v769
        %822 = vst [vmem:[%s221 + $0x58] sm:$0xff] %v770
        %823 = vst [vmem:[%s221 + $0x60] sm:$0xff] %v771
        %824 = vst [vmem:[%s221 + $0x68] sm:$0xff] %v772
        %825 = vst [vmem:[%s221 + $0x70] sm:$0xff] %v773
        %826 = vst [vmem:[%s221 + $0x78] sm:$0xff] %v774
        %827 = vst [vmem:[%s221 + $0x80] sm:$0xff] %v775
        %828 = vst [vmem:[%s221 + $0x88] sm:$0xff] %v776
        %829 = vst [vmem:[%s221 + $0x90] sm:$0xff] %v777
        %830 = vst [vmem:[%s221 + $0x98] sm:$0xff] %v778
        %831 = vst [vmem:[%s221 + $0xa0] sm:$0xff] %v779
        %832 = vst [vmem:[%s221 + $0xa8] sm:$0xff] %v780
        %833 = vst [vmem:[%s221 + $0xb0] sm:$0xff] %v781
        %834 = vst [vmem:[%s221 + $0xb8] sm:$0xff] %v782
        %835 = vst [vmem:[%s221 + $0xc0] sm:$0xff] %v783
        %836 = vst [vmem:[%s221 + $0xc8] sm:$0xff] %v784
        %837 = vst [vmem:[%s221 + $0xd0] sm:$0xff] %v785
        %838 = vst [vmem:[%s221 + $0xd8] sm:$0xff] %v786
        %839 = vst [vmem:[%s221 + $0xe0] sm:$0xff] %v787
        %840 = vst [vmem:[%s221 + $0xe8] sm:$0xff] %v788
        %841 = vst [vmem:[%s221 + $0xf0] sm:$0xff] %v789
        %842 = vst [vmem:[%s221 + $0xf8] sm:$0xff] %v790
        %843 = vst [vmem:[%s221 + $0x100] sm:$0xff] %v791
        %844 = vst [vmem:[%s221 + $0x108] sm:$0xff] %v792
        %845 = vst [vmem:[%s221 + $0x110] sm:$0xff] %v793
        %846 = vst [vmem:[%s221 + $0x118] sm:$0xff] %v794
        %847 = vst [vmem:[%s221 + $0x120] sm:$0xff] %v795
        %848 = vst [vmem:[%s221 + $0x128] sm:$0xff] %v796
        %849 = vst [vmem:[%s221 + $0x130] sm:$0xff] %v797
        %850 = vst [vmem:[%s221 + $0x138] sm:$0xff] %v798
        %851 = vst [vmem:[%s221 + $0x140] sm:$0xff] %v799
        %852 = vst [vmem:[%s221 + $0x148] sm:$0xff] %v800
        %853 = vst [vmem:[%s221 + $0x150] sm:$0xff] %v801
        %854 = vst [vmem:[%s221 + $0x158] sm:$0xff] %v802
        %855 = vst [vmem:[%s221 + $0x160] sm:$0xff] %v803
        %856 = vst [vmem:[%s221 + $0x168] sm:$0xff] %v804
        %857 = vst [vmem:[%s221 + $0x170] sm:$0xff] %v805
        %858 = vst [vmem:[%s221 + $0x178] sm:$0xff] %v806
        %859 = vst [vmem:[%s221 + $0x180] sm:$0xff] %v807
        %860 = vst [vmem:[%s221 + $0x188] sm:$0xff] %v808
        %861 = vst [vmem:[%s221 + $0x190] sm:$0xff] %v809
        %862 = vst [vmem:[%s221 + $0x198] sm:$0xff] %v810
        %s863 = sand.u32 %s97, 1
        %s864 = scalar_lea.sflag [#allocation4], %s863
        %s865 = sand.u32 %s97, 1
        %s866 = smul.addr %s865, 416
        %s867 = scalar_lea.vmem [#allocation8], %s866
        // Predicated region
        $region45: #{tpu_custom_call.1} parent=31 // pred_check
          %p868 = pneg %p107
        $region46: #{tpu_custom_call.1} parent=31 // pred_check_branch
          %870 = sbr.rel (%p868) target = $region48
        $region47: #{tpu_custom_call.1} parent=31 // pred_region
          %s871 = smul.u32 13, %s21
          %s872 = ssub.s32 25, %s871
          %p873 = scmp.lt.s32.totalorder %s872, 13
          %s874 = scalar_select %p873, %s872, 13
          %s875 = smul.u32 128, %s874
          %s876 = smul.u32 %s875, 4
          %s878 = ssub.s32 6656, %s876
          %879 = vsyncadd %s864, %s878
          %p880 = scmp.ne.s32.totalorder 0, %s876
          %s881 = smul.addr %s871, 4
          %s882 = smul.addr %s881, 128
          %s883 = scalar_lea.hbm %s3, %s882
          %s884 = smul.u32 32, %s874
          %s885 = sshll.u32 %s867, 4
          %s886 = int_to_ptr.vmem [resolvable:$true] %s885
          %s887 = sshll.u32 %s884, 4
          %891 = dma.vmem_to_hbm [thread:$0]  (%p880), %s886, %s887, %s883, %s864, 512, 512, 32
        $region48: #{tpu_custom_call.1} parent=31 // pred_fallthru
          _
      $region32: #{tpu_custom_call.1} parent=5 // pred_fallthru
        _
      %p892 = scmp.le.s32.totalorder 2, %s16
      // Predicated region
      $region49: #{tpu_custom_call.1} parent=5 // pred_check
        %p893 = pneg %p892
      $region50: #{tpu_custom_call.1} parent=5 // pred_check_branch
        %895 = sbr.rel (%p893) target = $region52
      $region51: #{tpu_custom_call.1} parent=5 // pred_region
        %s896 = ssub.s32 %s16, 2
        // Predicated region
        $region53: #{tpu_custom_call.1} parent=51 // pred_check
          %p897 = pneg %p113
        $region54: #{tpu_custom_call.1} parent=51 // pred_check_branch
          %899 = sbr.rel (%p897) target = $region56
        $region55: #{tpu_custom_call.1} parent=51 // pred_region
          %s900 = sand.u32 %s98, 1
          %s901 = scalar_lea.sflag [#allocation4], %s900
          %s902 = sand.u32 %s98, 1
          %s903 = smul.addr %s902, 416
          %s904 = scalar_lea.vmem [#allocation8], %s903
          %905 = dma.done %s901, 6656
        $region56: #{tpu_custom_call.1} parent=51 // pred_fallthru
          _
      $region52: #{tpu_custom_call.1} parent=5 // pred_fallthru
        _
    $region6: #{tpu_custom_call.1} parent=1 // loop_footer
      %s20 = sadd.s32 1, %s16
    $region7: #{tpu_custom_call.1} parent=1 // loop_footer_branch
      %15 = sbr.rel target = $region3
    $region8: #{tpu_custom_call.1} parent=1 // loop_exit
      _
    %906 = vsyncpa [#allocation3], 1
    %s907 = scalar_lea.sflag [#allocation3], 1
    %908 = vsyncpa %s907, 1
    %909 = vsyncpa [#allocation6], 1
    %910 = vsyncpa [#allocation4], 1
    %s911 = scalar_lea.sflag [#allocation4], 1
    %912 = vsyncpa %s911, 1

</llo_original>
